<compile_context>
chip_gen: v6e
topology: v6e:2x2x1
jax: 0.10.0
libtpu: 0.0.40
codegen_flags: <defaults>
</compile_context>

<pallas_src>
import jax
import jax.numpy as jnp
from jax.experimental import pallas as pl
from jax.experimental.pallas import tpu as pltpu


def _add_pos_kernel(x_ref, pos_ref, o_ref):
    # x_ref / o_ref: (tB, tL, D); pos_ref: (1, tL, D).
    # Leading-dim broadcast and dtype promotion (e.g. bf16 x + f32 pos -> f32,
    # matching the PyTorch reference) both happen here, fully hidden under the
    # DMA-bound pipeline.
    dt = o_ref.dtype
    o_ref[...] = x_ref[...].astype(dt) + pos_ref[...].astype(dt)


def _sublane_multiple(dtype) -> int:
    # Second-to-last block dim must be a multiple of this (or the full extent).
    itemsize = jnp.dtype(dtype).itemsize
    return max(8, (32 // (itemsize * 8)) * 8)  # 8 for f32, 16 for bf16, 32 for int8


def positional_encoding(
    x: jax.Array,
    pos_embed: jax.Array,
    *,
    target_block_bytes: int = 2 * 1024 * 1024,   # ~2 MiB tiles: roofline plateau
    min_bytes_for_kernel: int = 64 * 1024,       # below this, plain XLA add wins
    donate_x: bool = False,                      # reuse x's HBM buffer for output
) -> jax.Array:
    """x: (B, L, D); pos_embed: (1, max_len, D) with L <= max_len.

    Returns x + pos_embed[:, :L] (broadcast over batch), with the same dtype
    promotion as the PyTorch reference (e.g. bf16 + f32 -> f32).
    """
    B, L, D = x.shape
    assert pos_embed.ndim == 3 and pos_embed.shape[0] == 1 and pos_embed.shape[2] == D
    max_len = pos_embed.shape[1]
    assert L <= max_len, "sequence length must not exceed max_len"

    out_dtype = jnp.promote_types(x.dtype, pos_embed.dtype)
    x_item = jnp.dtype(x.dtype).itemsize
    sub = max(_sublane_multiple(x.dtype),
              _sublane_multiple(pos_embed.dtype),
              _sublane_multiple(out_dtype))

    # Shapes that cannot form lane-dense tiles (D % 128 != 0 -> masked vst.msk
    # partial stores) or that are tiny take the plain fused XLA broadcast add.
    # TODO(synk): the real structural win is fusing this add into the
    # producer / consumer kernel (epilogue) instead of a standalone 3-pass
    # HBM op; also worth sweeping pipeline_mode=pl.Buffered(3) on long grids.
    lane_ok = (D % 128 == 0)
    big_enough = x.size * x_item >= min_bytes_for_kernel
    if not (lane_ok and big_enough):
        return x + pos_embed[:, :L, :]

    # --- Tile selection ----------------------------------------------------
    # Size the seq tile toward ~target_block_bytes; when the whole sequence
    # fits, fold batch rows into the block so the grid does not degenerate
    # into B tiny steps.  3 arrays x 2 pipeline buffers x <=~2 MiB blocks stays
    # well under the 32 MiB scoped-VMEM default on every generation (v7x incl).
    rows_target = max(sub, target_block_bytes // max(1, D * x_item))
    pe = pos_embed
    if L <= rows_target:
        tL = L
        # Block second-to-last dim must be sublane-aligned or equal the FULL
        # extent of *both* x (L) and pos (max_len).  If neither holds, slice
        # pos to L rows on the host (rare: small, unaligned L < max_len).
        if not (L % sub == 0 or L == max_len):
            pe = pos_embed[:, :L, :]
        per_seq_bytes = L * D * x_item
        tB = int(max(1, min(B, target_block_bytes // max(1, per_seq_bytes))))
    else:
        tL = (min(rows_target, L) // sub) * sub
        tB = 1

    grid = (pl.cdiv(L, tL), pl.cdiv(B, tB))  # batch innermost -> pos tile reused

    in_specs = [
        pl.BlockSpec((tB, tL, D), lambda l, b: (b, l, 0)),   # x
        pl.BlockSpec((1, tL, D), lambda l, b: (0, l, 0)),    # pos (batch-invariant)
    ]
    out_spec = pl.BlockSpec((tB, tL, D), lambda l, b: (b, l, 0))

    io_aliases = {}
    if donate_x and jnp.dtype(out_dtype) == jnp.dtype(x.dtype):
        io_aliases = {0: 0}   # x (input 0) backs output 0; no extra HBM buffer

    return pl.pallas_call(
        _add_pos_kernel,
        out_shape=jax.ShapeDtypeStruct((B, L, D), out_dtype),
        grid_spec=pltpu.PrefetchScalarGridSpec(
            num_scalar_prefetch=0,
            grid=grid,
            in_specs=in_specs,
            out_specs=out_spec,
        ),
        input_output_aliases=io_aliases,
        compiler_params=pltpu.CompilerParams(
            # Elementwise, no accumulation: both axes independent, so let both
            # be split across TensorCores (v7x megacore); no-op on v5e/v6e.
            dimension_semantics=("parallel", "parallel"),
        ),
    )(x, pe)


if __name__ == "__main__":
    key = jax.random.PRNGKey(0)
    k1, k2, k3, k4, k5 = jax.random.split(key, 5)

    # 1) Lane-dense config -> Pallas path (batch folded into a single block).
    d_model, max_len, batch = 128, 64, 4
    pos = jax.random.normal(k1, (1, max_len, d_model), dtype=jnp.float32)
    x = jax.random.normal(k2, (batch, max_len, d_model), dtype=jnp.float32)
    out = positional_encoding(x, pos)
    jax.block_until_ready(out)
    assert out.shape == (batch, max_len, d_model) and out.dtype == jnp.float32
    assert jnp.allclose(out, x + pos, atol=1e-6, rtol=1e-6), "Pallas path mismatch"

    # 2) Mixed dtype (bf16 activations + f32 learned embedding): promotion to
    #    f32 happens inside the kernel, matching the PyTorch reference.
    xb = jax.random.normal(k3, (8, max_len, d_model), dtype=jnp.bfloat16)
    outb = positional_encoding(xb, pos)
    jax.block_until_ready(outb)
    assert outb.dtype == jnp.float32
    assert jnp.allclose(outb, xb.astype(jnp.float32) + pos, atol=1e-6, rtol=1e-6), \
        "mixed-dtype Pallas path mismatch"

    # 3) The module's tiny default config (d_model=32, max_len=5) is not
    #    lane-dense; it takes the plain broadcast-add fallback.
    pos_s = jax.random.normal(k4, (1, 5, 32), dtype=jnp.float32)
    x_s = jax.random.normal(k5, (2, 5, 32), dtype=jnp.float32)
    out_s = positional_encoding(x_s, pos_s)
    jax.block_until_ready(out_s)
    assert jnp.allclose(out_s, x_s + pos_s, atol=1e-6, rtol=1e-6), \
        "fallback path mismatch"

    print("KERNEL_OK")
</pallas_src>

<mosaic_0001>
module attributes {stable_mosaic.version = 11 : i64} {
  func.func @_add_pos_kernel(%arg0: i32, %arg1: i32, %arg2: memref<4x64x128xf32, #tpu.memory_space<vmem>>, %arg3: memref<1x64x128xf32, #tpu.memory_space<vmem>>, %arg4: memref<4x64x128xf32, #tpu.memory_space<vmem>>) attributes {dimension_semantics = [#tpu.dimension_semantics<parallel>, #tpu.dimension_semantics<parallel>], iteration_bounds = array<i64: 1, 1>, scalar_prefetch = 0 : i64, scratch_operands = 0 : i64, tpu.core_type = #tpu.core_type<tc>, window_params = [{transform_indices = @transform_0, window_bounds = array<i64: 4, 64, 128>}, {transform_indices = @transform_1, window_bounds = array<i64: 1, 64, 128>}, {transform_indices = @transform_2, window_bounds = array<i64: 4, 64, 128>}]} {
    %c0 = arith.constant 0 : index
    %c0_0 = arith.constant 0 : index
    %c0_1 = arith.constant 0 : index
    %0 = vector.load %arg2[%c0, %c0_0, %c0_1] : memref<4x64x128xf32, #tpu.memory_space<vmem>>, vector<4x64x128xf32>
    %c0_2 = arith.constant 0 : index
    %c0_3 = arith.constant 0 : index
    %c0_4 = arith.constant 0 : index
    %1 = vector.load %arg3[%c0_2, %c0_3, %c0_4] : memref<1x64x128xf32, #tpu.memory_space<vmem>>, vector<1x64x128xf32>
    %2 = vector.broadcast %1 : vector<1x64x128xf32> to vector<4x64x128xf32>
    %3 = arith.addf %0, %2 : vector<4x64x128xf32>
    %c0_5 = arith.constant 0 : index
    %c0_6 = arith.constant 0 : index
    %c0_7 = arith.constant 0 : index
    %4 = vector.load %arg4[%c0_5, %c0_6, %c0_7] : memref<4x64x128xf32, #tpu.memory_space<vmem>>, vector<4x64x128xf32>
    tpu.vector_store %arg4[%c0_5, %c0_6, %c0_7], %3 {strides = array<i32>} : memref<4x64x128xf32, #tpu.memory_space<vmem>>, vector<4x64x128xf32>,
    return
  }
  func.func @transform_0(%arg0: i32, %arg1: i32) -> (i32, i32, i32) {
    %c0_i32 = arith.constant 0 : i32
    %c0_i32_0 = arith.constant 0 : i32
    return %arg1, %arg0, %c0_i32 : i32, i32, i32
  }
  func.func @transform_1(%arg0: i32, %arg1: i32) -> (i32, i32, i32) {
    %c0_i32 = arith.constant 0 : i32
    %c0_i32_0 = arith.constant 0 : i32
    %c0_i32_1 = arith.constant 0 : i32
    return %c0_i32, %arg0, %c0_i32_0 : i32, i32, i32
  }
  func.func @transform_2(%arg0: i32, %arg1: i32) -> (i32, i32, i32) {
    %c0_i32 = arith.constant 0 : i32
    %c0_i32_0 = arith.constant 0 : i32
    return %arg1, %arg0, %c0_i32 : i32, i32, i32
  }
}

</mosaic_0001>

<llo_original>
// kernel: tpu_custom_call.1
$region0: #{tpu_custom_call.1}
  #allocation0 [shape = 'u32[]', space=smem, size = 0x4, offset = 0x4, fixed_abs, tag = 'smem constant byte address 0x4 - core index']
  #allocation1 [shape = 'u32[144,128]{1,0:T(1,128)}', space=vmem, size = 0x12000, scoped, tag = 'internal scratch']
  %s0 = inlined_call_operand.hbm [shape: f32[4,64,128], index: 0, kind: input, shape index: {}]
  %s1 = inlined_call_operand.hbm [shape: f32[1,64,128], index: 1, kind: input, shape index: {}]
  %s2 = inlined_call_operand.hbm [shape: f32[4,64,128], index: 2, kind: output, shape index: {}]
  %s3 = sld [smem:[#allocation0]]
  $region26: #{tpu_custom_call.1} parent=0
    _
  %s5 = ssub.s32 1, %s3
  %s6 = scalar_select 0, %s5, %s3
  $region1: #{tpu_custom_call.1} parent=0
    #allocation2 [shape = 'u8[131072]{0}', space=vmem, size = 0x20000, scoped, tag = 'input window, operand 0, single buffered']
    #allocation3 [shape = 's32[1]{0}', space=sflag, size = 0x4, scoped, tag = 'scoped memory for tpu_custom_call.1']
    #allocation4 [shape = 's32[1]{0}', space=sflag, size = 0x4, scoped, tag = 'scoped memory for tpu_custom_call.1']
    #allocation5 [shape = 'u8[32768]{0}', space=vmem, size = 0x8000, scoped, tag = 'input window, operand 1, single buffered']
    #allocation6 [shape = 's32[1]{0}', space=sflag, size = 0x4, scoped, tag = 'scoped memory for tpu_custom_call.1']
    #allocation7 [shape = 'u8[131072]{0}', space=vmem, size = 0x20000, scoped, tag = 'output window, operand 0, single buffered']
    %7 = vsyncpa [#allocation3], 0
    %8 = vsyncpa [#allocation6], 0
    %9 = vsyncpa [#allocation4], 0
    // Predicated region
    $region2: #{tpu_custom_call.1} parent=1 // pred_check
      _
    $region3: #{tpu_custom_call.1} parent=1 // pred_check_branch
      %11 = sbr.rel (0) target = $region5
    $region4: #{tpu_custom_call.1} parent=1 // pred_region
      %s13 = ssub.s32 4096, 4096
      %14 = vsyncadd [#allocation3], %s13
      %s15 = sshll.u32 [#allocation2], 4
      %s16 = int_to_ptr.vmem [resolvable:$true] %s15
      %21 = dma.hbm_to_vmem [thread:$0]  %s0, 4096, %s16, [#allocation3], 128, 128, 8
    $region5: #{tpu_custom_call.1} parent=1 // pred_fallthru
      _
    // Predicated region
    $region6: #{tpu_custom_call.1} parent=1 // pred_check
      _
    $region7: #{tpu_custom_call.1} parent=1 // pred_check_branch
      %23 = sbr.rel (0) target = $region9
    $region8: #{tpu_custom_call.1} parent=1 // pred_region
      %s25 = ssub.s32 1024, 1024
      %26 = vsyncadd [#allocation6], %s25
      %s27 = sshll.u32 [#allocation5], 4
      %s28 = int_to_ptr.vmem [resolvable:$true] %s27
      %33 = dma.hbm_to_vmem [thread:$0]  %s1, 1024, %s28, [#allocation6], 128, 128, 8
    $region9: #{tpu_custom_call.1} parent=1 // pred_fallthru
      _
    // Predicated region
    $region10: #{tpu_custom_call.1} parent=1 // pred_check
      _
    $region11: #{tpu_custom_call.1} parent=1 // pred_check_branch
      %35 = sbr.rel (0) target = $region13
    $region12: #{tpu_custom_call.1} parent=1 // pred_region
      %36 = dma.done [#allocation3], 4096
    $region13: #{tpu_custom_call.1} parent=1 // pred_fallthru
      _
    // Predicated region
    $region14: #{tpu_custom_call.1} parent=1 // pred_check
      _
    $region15: #{tpu_custom_call.1} parent=1 // pred_check_branch
      %38 = sbr.rel (0) target = $region17
    $region16: #{tpu_custom_call.1} parent=1 // pred_region
      %39 = dma.done [#allocation6], 1024
    $region17: #{tpu_custom_call.1} parent=1 // pred_fallthru
      _
    %v40 = vld [vmem:[#allocation2] sm:$0xff]
    %v41 = vld [vmem:[#allocation2 + $0x8] sm:$0xff]
    %v42 = vld [vmem:[#allocation2 + $0x10] sm:$0xff]
    %v43 = vld [vmem:[#allocation2 + $0x18] sm:$0xff]
    %v44 = vld [vmem:[#allocation2 + $0x20] sm:$0xff]
    %v45 = vld [vmem:[#allocation2 + $0x28] sm:$0xff]
    %v46 = vld [vmem:[#allocation2 + $0x30] sm:$0xff]
    %v47 = vld [vmem:[#allocation2 + $0x38] sm:$0xff]
    %v48 = vld [vmem:[#allocation2 + $0x40] sm:$0xff]
    %v49 = vld [vmem:[#allocation2 + $0x48] sm:$0xff]
    %v50 = vld [vmem:[#allocation2 + $0x50] sm:$0xff]
    %v51 = vld [vmem:[#allocation2 + $0x58] sm:$0xff]
    %v52 = vld [vmem:[#allocation2 + $0x60] sm:$0xff]
    %v53 = vld [vmem:[#allocation2 + $0x68] sm:$0xff]
    %v54 = vld [vmem:[#allocation2 + $0x70] sm:$0xff]
    %v55 = vld [vmem:[#allocation2 + $0x78] sm:$0xff]
    %v56 = vld [vmem:[#allocation2 + $0x80] sm:$0xff]
    %v57 = vld [vmem:[#allocation2 + $0x88] sm:$0xff]
    %v58 = vld [vmem:[#allocation2 + $0x90] sm:$0xff]
    %v59 = vld [vmem:[#allocation2 + $0x98] sm:$0xff]
    %v60 = vld [vmem:[#allocation2 + $0xa0] sm:$0xff]
    %v61 = vld [vmem:[#allocation2 + $0xa8] sm:$0xff]
    %v62 = vld [vmem:[#allocation2 + $0xb0] sm:$0xff]
    %v63 = vld [vmem:[#allocation2 + $0xb8] sm:$0xff]
    %v64 = vld [vmem:[#allocation2 + $0xc0] sm:$0xff]
    %v65 = vld [vmem:[#allocation2 + $0xc8] sm:$0xff]
    %v66 = vld [vmem:[#allocation2 + $0xd0] sm:$0xff]
    %v67 = vld [vmem:[#allocation2 + $0xd8] sm:$0xff]
    %v68 = vld [vmem:[#allocation2 + $0xe0] sm:$0xff]
    %v69 = vld [vmem:[#allocation2 + $0xe8] sm:$0xff]
    %v70 = vld [vmem:[#allocation2 + $0xf0] sm:$0xff]
    %v71 = vld [vmem:[#allocation2 + $0xf8] sm:$0xff]
    %v72 = vld [vmem:[#allocation5] sm:$0xff]
    %v73 = vld [vmem:[#allocation5 + $0x8] sm:$0xff]
    %v74 = vld [vmem:[#allocation5 + $0x10] sm:$0xff]
    %v75 = vld [vmem:[#allocation5 + $0x18] sm:$0xff]
    %v76 = vld [vmem:[#allocation5 + $0x20] sm:$0xff]
    %v77 = vld [vmem:[#allocation5 + $0x28] sm:$0xff]
    %v78 = vld [vmem:[#allocation5 + $0x30] sm:$0xff]
    %v79 = vld [vmem:[#allocation5 + $0x38] sm:$0xff]
    %v80 = vadd.f32 %v40, %v72
    %v81 = vadd.f32 %v41, %v73
    %v82 = vadd.f32 %v42, %v74
    %v83 = vadd.f32 %v43, %v75
    %v84 = vadd.f32 %v44, %v76
    %v85 = vadd.f32 %v45, %v77
    %v86 = vadd.f32 %v46, %v78
    %v87 = vadd.f32 %v47, %v79
    %v88 = vadd.f32 %v48, %v72
    %v89 = vadd.f32 %v49, %v73
    %v90 = vadd.f32 %v50, %v74
    %v91 = vadd.f32 %v51, %v75
    %v92 = vadd.f32 %v52, %v76
    %v93 = vadd.f32 %v53, %v77
    %v94 = vadd.f32 %v54, %v78
    %v95 = vadd.f32 %v55, %v79
    %v96 = vadd.f32 %v56, %v72
    %v97 = vadd.f32 %v57, %v73
    %v98 = vadd.f32 %v58, %v74
    %v99 = vadd.f32 %v59, %v75
    %v100 = vadd.f32 %v60, %v76
    %v101 = vadd.f32 %v61, %v77
    %v102 = vadd.f32 %v62, %v78
    %v103 = vadd.f32 %v63, %v79
    %v104 = vadd.f32 %v64, %v72
    %v105 = vadd.f32 %v65, %v73
    %v106 = vadd.f32 %v66, %v74
    %v107 = vadd.f32 %v67, %v75
    %v108 = vadd.f32 %v68, %v76
    %v109 = vadd.f32 %v69, %v77
    %v110 = vadd.f32 %v70, %v78
    %v111 = vadd.f32 %v71, %v79
    %112 = vst [vmem:[#allocation7] sm:$0xff] %v80
    %113 = vst [vmem:[#allocation7 + $0x8] sm:$0xff] %v81
    %114 = vst [vmem:[#allocation7 + $0x10] sm:$0xff] %v82
    %115 = vst [vmem:[#allocation7 + $0x18] sm:$0xff] %v83
    %116 = vst [vmem:[#allocation7 + $0x20] sm:$0xff] %v84
    %117 = vst [vmem:[#allocation7 + $0x28] sm:$0xff] %v85
    %118 = vst [vmem:[#allocation7 + $0x30] sm:$0xff] %v86
    %119 = vst [vmem:[#allocation7 + $0x38] sm:$0xff] %v87
    %120 = vst [vmem:[#allocation7 + $0x40] sm:$0xff] %v88
    %121 = vst [vmem:[#allocation7 + $0x48] sm:$0xff] %v89
    %122 = vst [vmem:[#allocation7 + $0x50] sm:$0xff] %v90
    %123 = vst [vmem:[#allocation7 + $0x58] sm:$0xff] %v91
    %124 = vst [vmem:[#allocation7 + $0x60] sm:$0xff] %v92
    %125 = vst [vmem:[#allocation7 + $0x68] sm:$0xff] %v93
    %126 = vst [vmem:[#allocation7 + $0x70] sm:$0xff] %v94
    %127 = vst [vmem:[#allocation7 + $0x78] sm:$0xff] %v95
    %128 = vst [vmem:[#allocation7 + $0x80] sm:$0xff] %v96
    %129 = vst [vmem:[#allocation7 + $0x88] sm:$0xff] %v97
    %130 = vst [vmem:[#allocation7 + $0x90] sm:$0xff] %v98
    %131 = vst [vmem:[#allocation7 + $0x98] sm:$0xff] %v99
    %132 = vst [vmem:[#allocation7 + $0xa0] sm:$0xff] %v100
    %133 = vst [vmem:[#allocation7 + $0xa8] sm:$0xff] %v101
    %134 = vst [vmem:[#allocation7 + $0xb0] sm:$0xff] %v102
    %135 = vst [vmem:[#allocation7 + $0xb8] sm:$0xff] %v103
    %136 = vst [vmem:[#allocation7 + $0xc0] sm:$0xff] %v104
    %137 = vst [vmem:[#allocation7 + $0xc8] sm:$0xff] %v105
    %138 = vst [vmem:[#allocation7 + $0xd0] sm:$0xff] %v106
    %139 = vst [vmem:[#allocation7 + $0xd8] sm:$0xff] %v107
    %140 = vst [vmem:[#allocation7 + $0xe0] sm:$0xff] %v108
    %141 = vst [vmem:[#allocation7 + $0xe8] sm:$0xff] %v109
    %142 = vst [vmem:[#allocation7 + $0xf0] sm:$0xff] %v110
    %143 = vst [vmem:[#allocation7 + $0xf8] sm:$0xff] %v111
    // Predicated region
    $region18: #{tpu_custom_call.1} parent=1 // pred_check
      _
    $region19: #{tpu_custom_call.1} parent=1 // pred_check_branch
      %145 = sbr.rel (0) target = $region21
    $region20: #{tpu_custom_call.1} parent=1 // pred_region
      %s147 = ssub.s32 4096, 4096
      %148 = vsyncadd [#allocation4], %s147
      %s149 = sshll.u32 [#allocation7], 4
      %s150 = int_to_ptr.vmem [resolvable:$true] %s149
      %155 = dma.vmem_to_hbm [thread:$0]  %s150, 4096, %s2, [#allocation4], 128, 128, 8
    $region21: #{tpu_custom_call.1} parent=1 // pred_fallthru
      _
    // Predicated region
    $region22: #{tpu_custom_call.1} parent=1 // pred_check
      _
    $region23: #{tpu_custom_call.1} parent=1 // pred_check_branch
      %157 = sbr.rel (0) target = $region25
    $region24: #{tpu_custom_call.1} parent=1 // pred_region
      %158 = dma.done [#allocation4], 4096
    $region25: #{tpu_custom_call.1} parent=1 // pred_fallthru
      _
    %159 = vsyncpa [#allocation3], 1
    %160 = vsyncpa [#allocation6], 1
    %161 = vsyncpa [#allocation4], 1

</llo_original>
